<compile_context>
chip_gen: v7x
topology: tpu7x:2x2x1
jax: 0.10.0
libtpu: 0.0.40
codegen_flags: <defaults>
</compile_context>

<pallas_src>
import jax
import jax.numpy as jnp
from jax import lax
from jax.experimental import pallas as pl
from jax.experimental.pallas import tpu as pltpu


def _round_up(x, m):
    return (x + m - 1) // m * m


def _moe_kernel(eff_e_ref, eff_f_ref, n_active_ref,   # scalar prefetch (SMEM)
                x_ref, guw_ref, dw_ref, rt_ref,        # VMEM input tiles
                o_ref,                                  # output tile
                acc_ref):                               # f32 scratch accumulator
    del eff_f_ref  # only consumed by the index_maps
    e = pl.program_id(1)
    f = pl.program_id(2)

    @pl.when(jnp.logical_and(e == 0, f == 0))
    def _init():
        acc_ref[...] = jnp.zeros_like(acc_ref)

    @pl.when(e < n_active_ref[0])          # skip experts with no routed tokens
    def _compute():
        x = x_ref[...]                      # (tm, H)  bf16 -> MXU native
        gw = guw_ref[0, 0]                  # (tf, H)  bf16
        uw = guw_ref[0, 1]                  # (tf, H)  bf16
        dims = (((1,), (1,)), ((), ()))     # contract the shared last axis (no .T)
        gate = lax.dot_general(x, gw, dims, preferred_element_type=jnp.float32)
        up = lax.dot_general(x, uw, dims, preferred_element_type=jnp.float32)
        act = (gate * jax.nn.sigmoid(gate) * up).astype(x.dtype)   # SiLU(gate) * up

        dw = dw_ref[0]                      # (H, tf)  bf16
        down = lax.dot_general(act, dw, dims,
                               preferred_element_type=jnp.float32)  # (tm, H) f32

        # per-token routing weight of the actual expert handled at this step
        actual_e = eff_e_ref[e]
        rt = rt_ref[...]                    # (tm, E) f32, lane-dense
        lane = lax.broadcasted_iota(jnp.int32, rt.shape, 1)
        route = jnp.sum(jnp.where(lane == actual_e, rt, 0.0),
                        axis=1, keepdims=True)          # (tm, 1)

        acc_ref[...] += down * route

    @pl.when(jnp.logical_and(e == pl.num_programs(1) - 1,
                             f == pl.num_programs(2) - 1))
    def _store():
        o_ref[...] = acc_ref[...].astype(o_ref.dtype)


def fused_moe_forward(hidden_states, topk_weights, topk_ids,
                      gate_up_weight, down_weight, *,
                      renormalize=False, tm=None, tf=None):
    """Pallas FusedMoE forward.

    hidden_states : (T, H)    activation dtype (bf16 here)
    topk_weights  : (T, K)    float
    topk_ids      : (T, K)    int32
    gate_up_weight: (E, 2F, H)
    down_weight   : (E, H, F)
    returns       : (T, H) in hidden_states.dtype
    """
    T, H = hidden_states.shape
    E, two_f, hw = gate_up_weight.shape
    assert hw == H and two_f % 2 == 0
    F = two_f // 2
    assert down_weight.shape == (E, H, F)

    # ---------------- routing (host/XLA side) ----------------
    tw = topk_weights.astype(jnp.float32)
    if renormalize:
        tw = tw / jnp.sum(tw, axis=-1, keepdims=True)
    one_hot = jax.nn.one_hot(topk_ids, E, dtype=jnp.float32)       # (T, K, E)
    route = jnp.einsum("tke,tk->te", one_hot, tw)                  # (T, E) lane-dense

    # Active-expert compaction: experts with routed tokens first; tail steps
    # re-use the last active expert's weight block (no extra DMA) and are
    # skipped inside the kernel.
    counts = jnp.sum(one_hot, axis=(0, 1)).astype(jnp.int32)       # (E,)
    active = counts > 0
    order = jnp.argsort(jnp.where(active, 0, 1).astype(jnp.int32)).astype(jnp.int32)
    n_active = jnp.sum(active).astype(jnp.int32)
    clamp = jnp.minimum(jnp.arange(E, dtype=jnp.int32),
                        jnp.maximum(n_active - 1, 0))
    eff_e = order[clamp].astype(jnp.int32)                         # (E,)

    # ---------------- tiling ----------------
    if tm is None:
        tm = 128 if T >= 128 else _round_up(T, 8)
    tm = max(8, _round_up(min(tm, _round_up(T, 8)), 8))
    if tf is None:
        tf = F
        for cand in (2048, 1024, 512, 256, 128):
            if F % cand == 0:
                tf = cand
                break
    assert F % tf == 0, "ffn_dim must be divisible by the ffn tile size"
    n_f = F // tf

    e_ids = jnp.arange(E, dtype=jnp.int32)[:, None]
    f_ids = jnp.arange(n_f, dtype=jnp.int32)[None, :]
    eff_f = jnp.where(e_ids < n_active, f_ids, n_f - 1)            # (E, n_f)
    eff_f = eff_f.reshape(-1).astype(jnp.int32)                    # flat for SMEM
    n_active_arr = jnp.reshape(n_active, (1,))

    T_pad = _round_up(T, tm)
    n_t = T_pad // tm
    if T_pad != T:
        hidden_states = jnp.pad(hidden_states, ((0, T_pad - T), (0, 0)))
        route = jnp.pad(route, ((0, T_pad - T), (0, 0)))

    gu_w = gate_up_weight.reshape(E, 2, F, H)   # gate / up rows as a clean axis

    # ---------------- index maps (prefetch refs are trailing args) ----------
    def x_map(ti, e, f, eref, fref, naref):
        return (ti, 0)

    def guw_map(ti, e, f, eref, fref, naref):
        return (eref[e], 0, fref[e * n_f + f], 0)

    def dw_map(ti, e, f, eref, fref, naref):
        return (eref[e], 0, fref[e * n_f + f])

    def rt_map(ti, e, f, eref, fref, naref):
        return (ti, 0)

    def o_map(ti, e, f, eref, fref, naref):
        return (ti, 0)

    act_bytes = jnp.dtype(hidden_states.dtype).itemsize
    w_bytes = jnp.dtype(gate_up_weight.dtype).itemsize
    need = (2 * (tm * H * act_bytes             # x tile (double buffered)
                 + 2 * tf * H * w_bytes         # gate+up weight tile
                 + H * tf * w_bytes             # down weight tile
                 + tm * E * 4                   # routing table tile
                 + tm * H * act_bytes)          # output tile
            + tm * H * 4)                       # f32 accumulator scratch
    vmem_limit = int(min(96 * 1024 * 1024, max(32 * 1024 * 1024, 2 * need)))

    cost = pl.CostEstimate(
        flops=int(2 * T_pad * (2 * F * H + F * H) * E),
        transcendentals=int(T_pad * F * E),
        bytes_accessed=int((gate_up_weight.size + down_weight.size) * w_bytes
                           + 2 * T_pad * H * act_bytes + T_pad * E * 4),
    )

    out = pl.pallas_call(
        _moe_kernel,
        out_shape=jax.ShapeDtypeStruct((T_pad, H), hidden_states.dtype),
        grid_spec=pltpu.PrefetchScalarGridSpec(
            num_scalar_prefetch=3,
            grid=(n_t, E, n_f),
            in_specs=[
                pl.BlockSpec((tm, H), x_map),           # hidden_states tile
                pl.BlockSpec((1, 2, tf, H), guw_map),   # gate/up weight tile
                pl.BlockSpec((1, H, tf), dw_map),       # down weight tile
                pl.BlockSpec((tm, E), rt_map),          # dense routing table
            ],
            out_specs=pl.BlockSpec((tm, H), o_map),
            scratch_shapes=[pltpu.VMEM((tm, H), jnp.float32)],
        ),
        compiler_params=pltpu.CompilerParams(
            dimension_semantics=("parallel", "arbitrary", "arbitrary"),
            vmem_limit_bytes=vmem_limit),
        cost_estimate=cost,
    )(eff_e, eff_f, n_active_arr, hidden_states, gu_w, down_weight, route)

    return out[:T]


def _reference(hidden_states, topk_weights, topk_ids,
               gate_up_weight, down_weight, renormalize=False):
    """Pure-JAX reference of the same math (fp32)."""
    T, H = hidden_states.shape
    E, two_f, _ = gate_up_weight.shape
    F = two_f // 2
    x = hidden_states.astype(jnp.float32)
    tw = topk_weights.astype(jnp.float32)
    if renormalize:
        tw = tw / jnp.sum(tw, axis=-1, keepdims=True)
    out = jnp.zeros((T, H), jnp.float32)
    for e in range(E):
        gu = x @ gate_up_weight[e].astype(jnp.float32).T          # (T, 2F)
        act = jax.nn.silu(gu[:, :F]) * gu[:, F:]
        down = act @ down_weight[e].astype(jnp.float32).T         # (T, H)
        mask = jnp.sum(jnp.where(topk_ids == e, tw, 0.0), axis=-1, keepdims=True)
        out = out + down * mask
    return out.astype(hidden_states.dtype)


if __name__ == "__main__":
    # Small shapes that still exercise token tiling, F tiling, padding and the
    # empty-expert skip path: grid = (3 token tiles, 8 experts, 2 ffn tiles).
    T, H, F, E, K = 150, 128, 256, 8, 2
    dtype = jnp.bfloat16

    key = jax.random.PRNGKey(0)
    k1, k2, k3, k4 = jax.random.split(key, 4)

    hidden_states = jax.random.normal(k1, (T, H), dtype=jnp.float32).astype(dtype)
    gate_up_w = (jax.random.normal(k2, (E, 2 * F, H), dtype=jnp.float32) * 0.05).astype(dtype)
    down_w = (jax.random.normal(k3, (E, H, F), dtype=jnp.float32) * 0.05).astype(dtype)

    # Router: softmax logits -> top_k (routing is an input to FusedMoE.forward).
    # Starve the last two experts so the empty-expert skip path is exercised.
    logits = jax.random.normal(k4, (T, E), dtype=jnp.float32)
    logits = logits.at[:, E - 2:].set(-1e9)
    probs = jax.nn.softmax(logits, axis=-1)
    topk_weights, topk_ids = jax.lax.top_k(probs, K)
    topk_ids = topk_ids.astype(jnp.int32)

    out = fused_moe_forward(hidden_states, topk_weights, topk_ids,
                            gate_up_w, down_w, renormalize=False,
                            tm=64, tf=128)
    out = jax.block_until_ready(out)

    ref = _reference(hidden_states, topk_weights, topk_ids,
                     gate_up_w, down_w, renormalize=False)

    assert out.shape == (T, H) and out.dtype == dtype
    assert jnp.allclose(out.astype(jnp.float32), ref.astype(jnp.float32),
                        atol=3e-2, rtol=3e-2)

    print("KERNEL_OK")
</pallas_src>

<mosaic_0001>
module attributes {stable_mosaic.version = 11 : i64} {
  func.func @_moe_kernel(%arg0: i32, %arg1: i32, %arg2: i32, %arg3: memref<8xi32, #tpu.memory_space<smem>>, %arg4: memref<16xi32, #tpu.memory_space<smem>>, %arg5: memref<1xi32, #tpu.memory_space<smem>>, %arg6: memref<64x128xbf16, #tpu.memory_space<vmem>>, %arg7: memref<1x2x128x128xbf16, #tpu.memory_space<vmem>>, %arg8: memref<1x128x128xbf16, #tpu.memory_space<vmem>>, %arg9: memref<64x8xf32, #tpu.memory_space<vmem>>, %arg10: memref<64x128xbf16, #tpu.memory_space<vmem>>, %arg11: memref<64x128xf32, #tpu.memory_space<vmem>>) attributes {dimension_semantics = [#tpu.dimension_semantics<parallel>, #tpu.dimension_semantics<arbitrary>, #tpu.dimension_semantics<arbitrary>], iteration_bounds = array<i64: 3, 8, 2>, scalar_prefetch = 3 : i64, scratch_operands = 1 : i64, tpu.core_type = #tpu.core_type<tc>, window_params = [{transform_indices = @transform_0, window_bounds = array<i64: 64, 128>}, {transform_indices = @transform_1, window_bounds = array<i64: 1, 2, 128, 128>}, {transform_indices = @transform_2, window_bounds = array<i64: 1, 128, 128>}, {transform_indices = @transform_3, window_bounds = array<i64: 64, 8>}, {transform_indices = @transform_4, window_bounds = array<i64: 64, 128>}]} {
    %c0_i32 = arith.constant 0 : i32
    %0 = arith.cmpi eq, %arg1, %c0_i32 : i32
    %c0_i32_0 = arith.constant 0 : i32
    %1 = arith.cmpi eq, %arg2, %c0_i32_0 : i32
    %2 = arith.andi %0, %1 : i1
    %3 = arith.extui %2 : i1 to i32
    %c0_i32_1 = arith.constant 0 : i32
    %4 = arith.cmpi ne, %3, %c0_i32_1 : i32
    scf.if %4 {
      %cst = arith.constant 0.000000e+00 : f32
      %14 = vector.broadcast %cst : f32 to vector<64x128xf32>
      %c0_4 = arith.constant 0 : index
      %c0_5 = arith.constant 0 : index
      %15 = vector.load %arg11[%c0_4, %c0_5] : memref<64x128xf32, #tpu.memory_space<vmem>>, vector<64x128xf32>
      tpu.vector_store %arg11[%c0_4, %c0_5], %14 {strides = array<i32>} : memref<64x128xf32, #tpu.memory_space<vmem>>, vector<64x128xf32>,
    } else {
    }
    %c0 = arith.constant 0 : index
    %5 = memref.load %arg5[%c0] : memref<1xi32, #tpu.memory_space<smem>>
    %6 = arith.cmpi slt, %arg1, %5 : i32
    %7 = arith.extui %6 : i1 to i32
    %c0_i32_2 = arith.constant 0 : i32
    %8 = arith.cmpi ne, %7, %c0_i32_2 : i32
    scf.if %8 {
      %c0_4 = arith.constant 0 : index
      %c0_5 = arith.constant 0 : index
      %14 = vector.load %arg6[%c0_4, %c0_5] : memref<64x128xbf16, #tpu.memory_space<vmem>>, vector<64x128xbf16>
      %c0_6 = arith.constant 0 : index
      %c0_7 = arith.constant 0 : index
      %c0_8 = arith.constant 0 : index
      %c0_9 = arith.constant 0 : index
      %15 = vector.load %arg7[%c0_6, %c0_7, %c0_8, %c0_9] : memref<1x2x128x128xbf16, #tpu.memory_space<vmem>>, vector<1x1x128x128xbf16>
      %16 = vector.shape_cast %15 : vector<1x1x128x128xbf16> to vector<128x128xbf16>
      %c0_10 = arith.constant 0 : index
      %c1 = arith.constant 1 : index
      %c0_11 = arith.constant 0 : index
      %c0_12 = arith.constant 0 : index
      %17 = vector.load %arg7[%c0_10, %c1, %c0_11, %c0_12] : memref<1x2x128x128xbf16, #tpu.memory_space<vmem>>, vector<1x1x128x128xbf16>
      %18 = vector.shape_cast %17 : vector<1x1x128x128xbf16> to vector<128x128xbf16>
      %cst = arith.constant dense<0.000000e+00> : vector<64x128xf32>
      %19 = tpu.matmul %14, %16, %cst {dimension_numbers = #tpu.dot_dimension_numbers<[1], [1], [0], [0], [0, 0, 1, 0], [], []>} : vector<64x128xbf16>, vector<128x128xbf16>, vector<64x128xf32> -> vector<64x128xf32>
      %cst_13 = arith.constant dense<0.000000e+00> : vector<64x128xf32>
      %20 = tpu.matmul %14, %18, %cst_13 {dimension_numbers = #tpu.dot_dimension_numbers<[1], [1], [0], [0], [0, 0, 1, 0], [], []>} : vector<64x128xbf16>, vector<128x128xbf16>, vector<64x128xf32> -> vector<64x128xf32>
      %21 = arith.negf %19 : vector<64x128xf32>
      %22 = math.exp %21 : vector<64x128xf32>
      %cst_14 = arith.constant 1.000000e+00 : f32
      %23 = vector.broadcast %cst_14 : f32 to vector<64x128xf32>
      %24 = arith.addf %23, %22 : vector<64x128xf32>
      %25 = arith.divf %23, %24 : vector<64x128xf32>
      %26 = arith.mulf %19, %25 : vector<64x128xf32>
      %27 = arith.mulf %26, %20 : vector<64x128xf32>
      %28 = arith.truncf %27 : vector<64x128xf32> to vector<64x128xbf16>
      %c0_15 = arith.constant 0 : index
      %c0_16 = arith.constant 0 : index
      %c0_17 = arith.constant 0 : index
      %29 = vector.load %arg8[%c0_15, %c0_16, %c0_17] : memref<1x128x128xbf16, #tpu.memory_space<vmem>>, vector<1x128x128xbf16>
      %30 = vector.shape_cast %29 : vector<1x128x128xbf16> to vector<128x128xbf16>
      %cst_18 = arith.constant dense<0.000000e+00> : vector<64x128xf32>
      %31 = tpu.matmul %28, %30, %cst_18 {dimension_numbers = #tpu.dot_dimension_numbers<[1], [1], [0], [0], [0, 0, 1, 0], [], []>} : vector<64x128xbf16>, vector<128x128xbf16>, vector<64x128xf32> -> vector<64x128xf32>
      %32 = arith.index_cast %arg1 : i32 to index
      %33 = memref.load %arg3[%32] : memref<8xi32, #tpu.memory_space<smem>>
      %c0_19 = arith.constant 0 : index
      %c0_20 = arith.constant 0 : index
      %34 = vector.load %arg9[%c0_19, %c0_20] : memref<64x8xf32, #tpu.memory_space<vmem>>, vector<64x8xf32>
      %35 = tpu.iota {dimensions = array<i32: 1>} : vector<64x8xi32>
      %36 = vector.broadcast %33 : i32 to vector<64x8xi32>
      %37 = arith.cmpi eq, %35, %36 : vector<64x8xi32>
      %cst_21 = arith.constant 0.000000e+00 : f32
      %38 = vector.broadcast %cst_21 : f32 to vector<64x8xf32>
      %39 = arith.select %37, %34, %38 : vector<64x8xi1>, vector<64x8xf32>
      %cst_22 = arith.constant dense<0.000000e+00> : vector<64xf32>
      %40 = vector.multi_reduction <add>, %39, %cst_22 [1] : vector<64x8xf32> to vector<64xf32>
      %41 = vector.shape_cast %40 : vector<64xf32> to vector<64x1xf32>
      %c0_23 = arith.constant 0 : index
      %c0_24 = arith.constant 0 : index
      %42 = vector.load %arg11[%c0_23, %c0_24] : memref<64x128xf32, #tpu.memory_space<vmem>>, vector<64x128xf32>
      %43 = vector.broadcast %41 : vector<64x1xf32> to vector<64x128xf32>
      %44 = arith.mulf %31, %43 : vector<64x128xf32>
      %45 = arith.addf %42, %44 : vector<64x128xf32>
      %c0_25 = arith.constant 0 : index
      %c0_26 = arith.constant 0 : index
      %46 = vector.load %arg11[%c0_25, %c0_26] : memref<64x128xf32, #tpu.memory_space<vmem>>, vector<64x128xf32>
      tpu.vector_store %arg11[%c0_25, %c0_26], %45 {strides = array<i32>} : memref<64x128xf32, #tpu.memory_space<vmem>>, vector<64x128xf32>,
    } else {
    }
    %c7_i32 = arith.constant 7 : i32
    %9 = arith.cmpi eq, %arg1, %c7_i32 : i32
    %c1_i32 = arith.constant 1 : i32
    %10 = arith.cmpi eq, %arg2, %c1_i32 : i32
    %11 = arith.andi %9, %10 : i1
    %12 = arith.extui %11 : i1 to i32
    %c0_i32_3 = arith.constant 0 : i32
    %13 = arith.cmpi ne, %12, %c0_i32_3 : i32
    scf.if %13 {
      %c0_4 = arith.constant 0 : index
      %c0_5 = arith.constant 0 : index
      %14 = vector.load %arg11[%c0_4, %c0_5] : memref<64x128xf32, #tpu.memory_space<vmem>>, vector<64x128xf32>
      %15 = arith.truncf %14 : vector<64x128xf32> to vector<64x128xbf16>
      %c0_6 = arith.constant 0 : index
      %c0_7 = arith.constant 0 : index
      %16 = vector.load %arg10[%c0_6, %c0_7] : memref<64x128xbf16, #tpu.memory_space<vmem>>, vector<64x128xbf16>
      tpu.vector_store %arg10[%c0_6, %c0_7], %15 {strides = array<i32>} : memref<64x128xbf16, #tpu.memory_space<vmem>>, vector<64x128xbf16>,
    } else {
    }
    return
  }
  func.func @transform_0(%arg0: i32, %arg1: i32, %arg2: i32, %arg3: memref<8xi32, #tpu.memory_space<smem>>, %arg4: memref<16xi32, #tpu.memory_space<smem>>, %arg5: memref<1xi32, #tpu.memory_space<smem>>) -> (i32, i32) {
    %c0_i32 = arith.constant 0 : i32
    %c0_i32_0 = arith.constant 0 : i32
    return %arg0, %c0_i32 : i32, i32
  }
  func.func @transform_1(%arg0: i32, %arg1: i32, %arg2: i32, %arg3: memref<8xi32, #tpu.memory_space<smem>>, %arg4: memref<16xi32, #tpu.memory_space<smem>>, %arg5: memref<1xi32, #tpu.memory_space<smem>>) -> (i32, i32, i32, i32) {
    %0 = arith.index_cast %arg1 : i32 to index
    %1 = memref.load %arg3[%0] : memref<8xi32, #tpu.memory_space<smem>>
    %c2_i32 = arith.constant 2 : i32
    %2 = arith.muli %arg1, %c2_i32 : i32
    %3 = arith.addi %2, %arg2 : i32
    %4 = arith.index_cast %3 : i32 to index
    %5 = memref.load %arg4[%4] : memref<16xi32, #tpu.memory_space<smem>>
    %c0_i32 = arith.constant 0 : i32
    %c0_i32_0 = arith.constant 0 : i32
    %c0_i32_1 = arith.constant 0 : i32
    return %1, %c0_i32, %5, %c0_i32_0 : i32, i32, i32, i32
  }
  func.func @transform_2(%arg0: i32, %arg1: i32, %arg2: i32, %arg3: memref<8xi32, #tpu.memory_space<smem>>, %arg4: memref<16xi32, #tpu.memory_space<smem>>, %arg5: memref<1xi32, #tpu.memory_space<smem>>) -> (i32, i32, i32) {
    %0 = arith.index_cast %arg1 : i32 to index
    %1 = memref.load %arg3[%0] : memref<8xi32, #tpu.memory_space<smem>>
    %c2_i32 = arith.constant 2 : i32
    %2 = arith.muli %arg1, %c2_i32 : i32
    %3 = arith.addi %2, %arg2 : i32
    %4 = arith.index_cast %3 : i32 to index
    %5 = memref.load %arg4[%4] : memref<16xi32, #tpu.memory_space<smem>>
    %c0_i32 = arith.constant 0 : i32
    %c0_i32_0 = arith.constant 0 : i32
    return %1, %c0_i32, %5 : i32, i32, i32
  }
  func.func @transform_3(%arg0: i32, %arg1: i32, %arg2: i32, %arg3: memref<8xi32, #tpu.memory_space<smem>>, %arg4: memref<16xi32, #tpu.memory_space<smem>>, %arg5: memref<1xi32, #tpu.memory_space<smem>>) -> (i32, i32) {
    %c0_i32 = arith.constant 0 : i32
    %c0_i32_0 = arith.constant 0 : i32
    return %arg0, %c0_i32 : i32, i32
  }
  func.func @transform_4(%arg0: i32, %arg1: i32, %arg2: i32, %arg3: memref<8xi32, #tpu.memory_space<smem>>, %arg4: memref<16xi32, #tpu.memory_space<smem>>, %arg5: memref<1xi32, #tpu.memory_space<smem>>) -> (i32, i32) {
    %c0_i32 = arith.constant 0 : i32
    %c0_i32_0 = arith.constant 0 : i32
    return %arg0, %c0_i32 : i32, i32
  }
}

</mosaic_0001>

<llo_original>
// kernel: tpu_custom_call.1
$region0: #{tpu_custom_call.1}
  #allocation0 [shape = 'u32[]', space=smem, size = 0x4, offset = 0x4, fixed_abs, tag = 'smem constant byte address 0x4 - core index']
  #allocation1 [shape = 'u32[144,128]{1,0:T(1,128)}', space=vmem, size = 0x12000, scoped, tag = 'internal scratch']
  #allocation2 [shape = 'f32[64,128]{1,0:T(8,128)}', space=vmem, size = 0x8000, scoped, tag = 'scratch operand']
  #allocation3 [shape = 's32[1]{0}', space=sflag, size = 0x4, scoped, tag = 'scoped memory for tpu_custom_call.1']
  #allocation4 [shape = 'u8[512]{0}', space=smem, size = 0x200, scoped, tag = 'prefetched SMEM operand 0']
  #allocation5 [shape = 'u8[512]{0}', space=smem, size = 0x200, scoped, tag = 'prefetched SMEM operand 1']
  #allocation6 [shape = 's32[1]{0:T(128)S(6)}', space=smem, size = 0x200, scoped, tag = 'prefetched SMEM operand 2']
  #allocation13 [shape = 's32[]', space=sflag, size = 0x4, offset = 0, fixed_abs, tag = 'sflag constant byte address 0x0 - dummy sync flag']
  %s0 = inlined_call_operand.vmem [shape: s32[8], index: 0, kind: input, shape index: {}]
  %s1 = inlined_call_operand.vmem [shape: s32[16], index: 1, kind: input, shape index: {}]
  %s2 = inlined_call_operand.<no memory space> [shape: s32[1], index: 2, kind: input, shape index: {}]
  %s3 = inlined_call_operand.vmem [shape: bf16[192,128], index: 3, kind: input, shape index: {}]
  %s4 = inlined_call_operand.hbm [shape: bf16[8,2,256,128], index: 4, kind: input, shape index: {}]
  %s5 = inlined_call_operand.hbm [shape: bf16[8,128,256], index: 5, kind: input, shape index: {}]
  %s6 = inlined_call_operand.vmem [shape: f32[192,8], index: 6, kind: input, shape index: {}]
  %s7 = inlined_call_operand.hbm [shape: bf16[192,128], index: 7, kind: output, shape index: {}]
  %s8 = sld [smem:[#allocation0]]
  $region69: #{tpu_custom_call.1} parent=0
    _
  %s10 = ssub.s32 1, %s8
  %s11 = scalar_select 0, %s10, %s8
  %s12 = sshll.u32 %s0, 4
  %s13 = int_to_ptr.vmem [resolvable:$true] %s12
  %15 = dma.vmem_to_smem %s13, 16, [#allocation4], [#allocation3]
  %s16 = sshll.u32 %s1, 4
  %s17 = int_to_ptr.vmem [resolvable:$true] %s16
  %19 = dma.vmem_to_smem %s17, 16, [#allocation5], [#allocation3]
  %20 = sst [smem:[#allocation6]] %s2
  %21 = dma.done [#allocation3], 32
  %22 = sfence
  $region1: #{tpu_custom_call.1} parent=0
    #allocation7 [shape = 'u8[131072]{0}', space=vmem, size = 0x20000, scoped, tag = 'input window, operand 4']
    #allocation8 [shape = 's32[2]{0}', space=sflag, size = 0x8, scoped, tag = 'scoped memory for tpu_custom_call.1']
    #allocation9 [shape = 's32[2]{0}', space=sflag, size = 0x8, scoped, tag = 'scoped memory for tpu_custom_call.1']
    #allocation10 [shape = 'u8[65536]{0}', space=vmem, size = 0x10000, scoped, tag = 'input window, operand 5']
    #allocation11 [shape = 's32[2]{0}', space=sflag, size = 0x8, scoped, tag = 'scoped memory for tpu_custom_call.1']
    #allocation12 [shape = 'u8[32768]{0}', space=vmem, size = 0x8000, scoped, tag = 'output window, operand 0']
    %23 = vsyncpa [#allocation8], 0
    %s24 = scalar_lea.sflag [#allocation8], 1
    %25 = vsyncpa %s24, 0
    %26 = vsyncpa [#allocation11], 0
    %s27 = scalar_lea.sflag [#allocation11], 1
    %28 = vsyncpa %s27, 0
    %29 = vsyncpa [#allocation9], 0
    %s30 = scalar_lea.sflag [#allocation9], 1
    %31 = vsyncpa %s30, 0
    loop: start=0, step=1, limit=50
    $region2: #{tpu_custom_call.1} parent=1 // loop_pre_header
      _
    $region3: #{tpu_custom_call.1} parent=1 // loop_header
      %s33 = sphi 0, %s37
      %p34 = scmp.ge.s32.totalorder %s33, 50
      %s40 = sphi 0, %s59
      %s41 = sphi 0, %s55
      %s42 = sphi 0, %s51
      %s43 = sphi 0, %s40
      %s44 = sphi 0, %s41
      %s45 = sphi 0, %s42
      %s46 = sphi 0, %s43
      %s47 = sphi 0, %s44
      %s48 = sphi 0, %s45
      %s62 = sphi 0, %s64
      %s65 = sphi 0, %s62
      %s66 = sphi 0, %s65
      %s82 = sphi 0, %s66
      %s98 = sphi 0, %s100
      %s101 = sphi 0, %s98
      %s102 = sphi 0, %s101
      %s118 = sphi 0, %s102
      %s134 = sphi 0, %s136
      %s137 = sphi 0, %s134
      %s138 = sphi 0, %s137
      %s154 = sphi 0, %s138
      %s160 = sphi 0, %s162
      %s163 = sphi 0, %s160
      %s164 = sphi 0, %s163
      %s180 = sphi 0, %s164
      %s186 = sphi 0, %s188
      %s189 = sphi 0, %s186
      %s190 = sphi 0, %s189
      %s206 = sphi 0, %s190
    $region4: #{tpu_custom_call.1} parent=1 // loop_header_branch
      %36 = sbr.rel (%p34) target = $region8
    $region5: #{tpu_custom_call.1} parent=1 // loop_body
      %s38 = ssub.s32 %s33, 1
      %s39 = ssub.s32 %s33, 2
      %s49 = sadd.s32 1, %s42
      %p50 = scmp.ge.s32.totalorder %s49, 2
      %s51 = scalar_select %p50, 0, %s49
      %s52 = sadd.s32 1, %s41
      %s53 = scalar_select %p50, %s52, %s41
      %p54 = scmp.ge.s32.totalorder %s53, 8
      %s55 = scalar_select %p54, 0, %s53
      %s56 = sadd.s32 1, %s40
      %s57 = scalar_select %p54, %s56, %s40
      %p58 = scmp.ge.s32.totalorder %s57, 3
      %s59 = scalar_select %p58, 0, %s57
      %s60 = ssub.s32 %s40, %s59
      %p61 = scmp.eq.s32.totalorder %s60, 0
      %s63 = sadd.s32 %s62, 1
      %s64 = scalar_select %p61, %s62, %s63
      %p67 = pneg %p61
      %p68 = scmp.eq.s32.totalorder %s33, 47
      %p69 = por %p67, %p68
      %p70 = scmp.ne.s32.totalorder %s62, %s65
      %p71 = scmp.eq.s32.totalorder %s33, 0
      %p72 = por %p70, %p71
      %p73 = scmp.ne.s32.totalorder %s62, %s65
      %p74 = scmp.eq.s32.totalorder %s38, 47
      %p75 = por %p73, %p74
      %p76 = scmp.ne.s32.totalorder %s65, %s66
      %p77 = scmp.eq.s32.totalorder %s38, 0
      %p78 = por %p76, %p77
      %p79 = scmp.ne.s32.totalorder %s65, %s66
      %p80 = scmp.eq.s32.totalorder %s39, 47
      %p81 = por %p79, %p80
      %p83 = scmp.ne.s32.totalorder %s66, %s82
      %p84 = scmp.eq.s32.totalorder %s39, 0
      %p85 = por %p83, %p84
      %s86 = sld [smem:[#allocation4 + %s41]]
      %s87 = smul.u32 %s41, 2
      %s88 = sadd.s32 %s87, %s42
      %s89 = sld [smem:[#allocation5 + %s88]]
      %s90 = sld [smem:[#allocation4 + %s55]]
      %s91 = smul.u32 %s55, 2
      %s92 = sadd.s32 %s91, %s51
      %s93 = sld [smem:[#allocation5 + %s92]]
      %s94 = ssub.s32 %s86, %s90
      %s95 = ssub.s32 %s89, %s93
      %s96 = sor.u32 %s94, %s95
      %p97 = scmp.eq.s32.totalorder %s96, 0
      %s99 = sadd.s32 %s98, 1
      %s100 = scalar_select %p97, %s98, %s99
      %p103 = pneg %p97
      %p104 = scmp.eq.s32.totalorder %s33, 47
      %p105 = por %p103, %p104
      %p106 = scmp.ne.s32.totalorder %s98, %s101
      %p107 = scmp.eq.s32.totalorder %s33, 0
      %p108 = por %p106, %p107
      %p109 = scmp.ne.s32.totalorder %s98, %s101
      %p110 = scmp.eq.s32.totalorder %s38, 47
      %p111 = por %p109, %p110
      %p112 = scmp.ne.s32.totalorder %s101, %s102
      %p113 = scmp.eq.s32.totalorder %s38, 0
      %p114 = por %p112, %p113
      %p115 = scmp.ne.s32.totalorder %s101, %s102
      %p116 = scmp.eq.s32.totalorder %s39, 47
      %p117 = por %p115, %p116
      %p119 = scmp.ne.s32.totalorder %s102, %s118
      %p120 = scmp.eq.s32.totalorder %s39, 0
      %p121 = por %p119, %p120
      %s122 = sld [smem:[#allocation4 + %s41]]
      %s123 = smul.u32 %s41, 2
      %s124 = sadd.s32 %s123, %s42
      %s125 = sld [smem:[#allocation5 + %s124]]
      %s126 = sld [smem:[#allocation4 + %s55]]
      %s127 = smul.u32 %s55, 2
      %s128 = sadd.s32 %s127, %s51
      %s129 = sld [smem:[#allocation5 + %s128]]
      %s130 = ssub.s32 %s122, %s126
      %s131 = ssub.s32 %s125, %s129
      %s132 = sor.u32 %s130, %s131
      %p133 = scmp.eq.s32.totalorder %s132, 0
      %s135 = sadd.s32 %s134, 1
      %s136 = scalar_select %p133, %s134, %s135
      %p139 = pneg %p133
      %p140 = scmp.eq.s32.totalorder %s33, 47
      %p141 = por %p139, %p140
      %p142 = scmp.ne.s32.totalorder %s134, %s137
      %p143 = scmp.eq.s32.totalorder %s33, 0
      %p144 = por %p142, %p143
      %p145 = scmp.ne.s32.totalorder %s134, %s137
      %p146 = scmp.eq.s32.totalorder %s38, 47
      %p147 = por %p145, %p146
      %p148 = scmp.ne.s32.totalorder %s137, %s138
      %p149 = scmp.eq.s32.totalorder %s38, 0
      %p150 = por %p148, %p149
      %p151 = scmp.ne.s32.totalorder %s137, %s138
      %p152 = scmp.eq.s32.totalorder %s39, 47
      %p153 = por %p151, %p152
      %p155 = scmp.ne.s32.totalorder %s138, %s154
      %p156 = scmp.eq.s32.totalorder %s39, 0
      %p157 = por %p155, %p156
      %s158 = ssub.s32 %s40, %s59
      %p159 = scmp.eq.s32.totalorder %s158, 0
      %s161 = sadd.s32 %s160, 1
      %s162 = scalar_select %p159, %s160, %s161
      %p165 = pneg %p159
      %p166 = scmp.eq.s32.totalorder %s33, 47
      %p167 = por %p165, %p166
      %p168 = scmp.ne.s32.totalorder %s160, %s163
      %p169 = scmp.eq.s32.totalorder %s33, 0
      %p170 = por %p168, %p169
      %p171 = scmp.ne.s32.totalorder %s160, %s163
      %p172 = scmp.eq.s32.totalorder %s38, 47
      %p173 = por %p171, %p172
      %p174 = scmp.ne.s32.totalorder %s163, %s164
      %p175 = scmp.eq.s32.totalorder %s38, 0
      %p176 = por %p174, %p175
      %p177 = scmp.ne.s32.totalorder %s163, %s164
      %p178 = scmp.eq.s32.totalorder %s39, 47
      %p179 = por %p177, %p178
      %p181 = scmp.ne.s32.totalorder %s164, %s180
      %p182 = scmp.eq.s32.totalorder %s39, 0
      %p183 = por %p181, %p182
      %s184 = ssub.s32 %s40, %s59
      %p185 = scmp.eq.s32.totalorder %s184, 0
      %s187 = sadd.s32 %s186, 1
      %s188 = scalar_select %p185, %s186, %s187
      %p191 = pneg %p185
      %p192 = scmp.eq.s32.totalorder %s33, 47
      %p193 = por %p191, %p192
      %p194 = scmp.ne.s32.totalorder %s186, %s189
      %p195 = scmp.eq.s32.totalorder %s33, 0
      %p196 = por %p194, %p195
      %p197 = scmp.ne.s32.totalorder %s186, %s189
      %p198 = scmp.eq.s32.totalorder %s38, 47
      %p199 = por %p197, %p198
      %p200 = scmp.ne.s32.totalorder %s189, %s190
      %p201 = scmp.eq.s32.totalorder %s38, 0
      %p202 = por %p200, %p201
      %p203 = scmp.ne.s32.totalorder %s189, %s190
      %p204 = scmp.eq.s32.totalorder %s39, 47
      %p205 = por %p203, %p204
      %p207 = scmp.ne.s32.totalorder %s190, %s206
      %p208 = scmp.eq.s32.totalorder %s39, 0
      %p209 = por %p207, %p208
      %p210 = scmp.le.s32.totalorder 1, %s33
      %p211 = scmp.lt.s32.totalorder %s33, 49
      %p212 = pnand %p210, %p211
      %p213 = pneg %p212
      // Predicated region
      $region9: #{tpu_custom_call.1} parent=5 // pred_check
        _
      $region10: #{tpu_custom_call.1} parent=5 // pred_check_branch
        %215 = sbr.rel (%p212) target = $region12
      $region11: #{tpu_custom_call.1} parent=5 // pred_region
        %s216 = ssub.s32 %s33, 1
      $region12: #{tpu_custom_call.1} parent=5 // pred_fallthru
        _
      %p217 = scmp.lt.s32.totalorder %s33, 48
      // Predicated region
      $region13: #{tpu_custom_call.1} parent=5 // pred_check
        %p218 = pneg %p217
      $region14: #{tpu_custom_call.1} parent=5 // pred_check_branch
        %220 = sbr.rel (%p218) target = $region16
      $region15: #{tpu_custom_call.1} parent=5 // pred_region
        // Predicated region
        $region17: #{tpu_custom_call.1} parent=15 // pred_check
          %p221 = pneg %p72
        $region18: #{tpu_custom_call.1} parent=15 // pred_check_branch
          %223 = sbr.rel (%p221) target = $region20
        $region19: #{tpu_custom_call.1} parent=15 // pred_region
          %s224 = smul.u32 8, %s40
          %p225 = scmp.lt.s32.totalorder %s224, 23
          %s226 = scalar_select %p225, %s224, 23
          %s227 = smul.addr %s226, 4
          %s228 = scalar_lea.vmem %s3, %s227
          %s229 = smul.u32 8, %s40
        $region20: #{tpu_custom_call.1} parent=15 // pred_fallthru
          _
        // Predicated region
        $region21: #{tpu_custom_call.1} parent=15 // pred_check
          %p230 = pneg %p108
        $region22: #{tpu_custom_call.1} parent=15 // pred_check_branch
          %232 = sbr.rel (%p230) target = $region24
        $region23: #{tpu_custom_call.1} parent=15 // pred_region
          #allocation14 [shape = 'u32[6]{0}', space=smem, size = 0x18, scoped, tag = 'DMA stride descriptor']
          %s233 = sand.u32 %s98, 1
          %s234 = scalar_lea.sflag [#allocation8], %s233
          %s235 = sand.u32 %s98, 1
          %s236 = smul.addr %s235, 128
          %s237 = scalar_lea.vmem [#allocation7], %s236
          %s238 = sld [smem:[#allocation4 + %s41]]
          %s239 = smul.u32 %s41, 2
          %s240 = sadd.s32 %s239, %s42
          %s241 = sld [smem:[#allocation5 + %s240]]
          %s242 = smul.u32 16, %s241
          %s244 = ssub.s32 2048, 2048
          %245 = vsyncadd %s234, %s244
          %s246 = smul.addr %s238, 64
          %s247 = sadd.s32 %s242, %s246
          %s248 = smul.addr %s247, 64
          %s249 = scalar_lea.hbm %s4, %s248
          %s251 = sshll.u32 1, 14
          %s252 = sxor.u32 4294967295, %s251
          %s254 = sld [smem:[#allocation0]]
          %s255 = sadd.s32 2, %s254
          %s257 = sshll.u32 7, 26
          %s258 = sxor.u32 4294967295, %s257
          %s259 = sand.u32 0, %s258
          %s260 = sshll.u32 %s255, 26
          %s261 = sor.u32 %s259, %s260
          %s262 = sshll.u32 %s237, 4
          %s263 = int_to_ptr.vmem [resolvable:$true] %s262
          %269 = sst [smem:[#allocation14]] 2048
          %s270 = scalar_lea.smem [#allocation14], 1
          %271 = sst [smem:[%s270]] 1024
          %s272 = scalar_lea.smem [#allocation14], 2
          %273 = sst [smem:[%s272]] 16
          %s274 = scalar_lea.smem [#allocation14], 3
          %275 = sst [smem:[%s274]] 64
          %s276 = scalar_lea.smem [#allocation14], 4
          %277 = sst [smem:[%s276]] 64
          %s278 = scalar_lea.smem [#allocation14], 5
          %279 = sst [smem:[%s278]] 4
          %281 = dma.general %s249, 2048, %s263, %s234, [#allocation13], [#allocation14], %s261, 0
        $region24: #{tpu_custom_call.1} parent=15 // pred_fallthru
          _
        // Predicated region
        $region25: #{tpu_custom_call.1} parent=15 // pred_check
          %p282 = pneg %p144
        $region26: #{tpu_custom_call.1} parent=15 // pred_check_branch
          %284 = sbr.rel (%p282) target = $region28
        $region27: #{tpu_custom_call.1} parent=15 // pred_region
          %s285 = sand.u32 %s134, 1
          %s286 = scalar_lea.sflag [#allocation11], %s285
          %s287 = sand.u32 %s134, 1
          %s288 = smul.addr %s287, 64
          %s289 = scalar_lea.vmem [#allocation10], %s288
          %s290 = sld [smem:[#allocation4 + %s41]]
          %s291 = smul.u32 %s41, 2
          %s292 = sadd.s32 %s291, %s42
          %s293 = sld [smem:[#allocation5 + %s292]]
          %s295 = ssub.s32 1024, 1024
          %296 = vsyncadd %s286, %s295
          %s297 = smul.addr %s290, 32
          %s298 = sadd.s32 %s293, %s297
          %s299 = smul.addr %s298, 64
          %s300 = scalar_lea.hbm %s5, %s299
          %s301 = sshll.u32 %s289, 4
          %s302 = int_to_ptr.vmem [resolvable:$true] %s301
          %307 = dma.hbm_to_vmem [thread:$0]  %s300, 1024, %s302, %s286, 128, 64, 4
        $region28: #{tpu_custom_call.1} parent=15 // pred_fallthru
          _
        // Predicated region
        $region29: #{tpu_custom_call.1} parent=15 // pred_check
          %p308 = pneg %p170
        $region30: #{tpu_custom_call.1} parent=15 // pred_check_branch
          %310 = sbr.rel (%p308) target = $region32
        $region31: #{tpu_custom_call.1} parent=15 // pred_region
          %s311 = smul.u32 8, %s40
          %p312 = scmp.lt.s32.totalorder %s311, 23
          %s313 = scalar_select %p312, %s311, 23
          %s314 = smul.addr %s313, 8
          %s315 = scalar_lea.vmem %s6, %s314
          %s316 = smul.u32 8, %s40
        $region32: #{tpu_custom_call.1} parent=15 // pred_fallthru
          _
      $region16: #{tpu_custom_call.1} parent=5 // pred_fallthru
        _
      %p317 = scmp.le.s32.totalorder 1, %s33
      %p318 = scmp.lt.s32.totalorder %s33, 49
      %p319 = pnand %p317, %p318
      %p320 = pneg %p319
      // Predicated region
      $region33: #{tpu_custom_call.1} parent=5 // pred_check
        _
      $region34: #{tpu_custom_call.1} parent=5 // pred_check_branch
        %322 = sbr.rel (%p319) target = $region36
      $region35: #{tpu_custom_call.1} parent=5 // pred_region
        %s323 = ssub.s32 %s33, 1
        %s324 = sand.u32 %s101, 1
        %s325 = scalar_lea.sflag [#allocation8], %s324
        %s326 = sand.u32 %s101, 1
        %s327 = smul.addr %s326, 128
        %s328 = scalar_lea.vmem [#allocation7], %s327
        // Predicated region
        $region37: #{tpu_custom_call.1} parent=35 // pred_check
          %p329 = pneg %p114
        $region38: #{tpu_custom_call.1} parent=35 // pred_check_branch
          %331 = sbr.rel (%p329) target = $region40
        $region39: #{tpu_custom_call.1} parent=35 // pred_region
          %332 = dma.done %s325, 2048
        $region40: #{tpu_custom_call.1} parent=35 // pred_fallthru
          _
        %s333 = sand.u32 %s137, 1
        %s334 = scalar_lea.sflag [#allocation11], %s333
        %s335 = sand.u32 %s137, 1
        %s336 = smul.addr %s335, 64
        %s337 = scalar_lea.vmem [#allocation10], %s336
        // Predicated region
        $region41: #{tpu_custom_call.1} parent=35 // pred_check
          %p338 = pneg %p150
        $region42: #{tpu_custom_call.1} parent=35 // pred_check_branch
          %340 = sbr.rel (%p338) target = $region44
        $region43: #{tpu_custom_call.1} parent=35 // pred_region
          %341 = dma.done %s334, 1024
        $region44: #{tpu_custom_call.1} parent=35 // pred_fallthru
          _
        %s342 = smul.u32 8, %s43
        %p343 = scmp.lt.s32.totalorder %s342, 23
        %s344 = scalar_select %p343, %s342, 23
        %s345 = smul.addr %s344, 4
        %s346 = scalar_lea.vmem %s3, %s345
        %p347 = pneg %p78
        %p348 = pneg %p75
        %s349 = sand.u32 %s101, 1
        %s350 = scalar_lea.sflag [#allocation8], %s349
        %s351 = sand.u32 %s101, 1
        %s352 = smul.addr %s351, 128
        %s353 = scalar_lea.vmem [#allocation7], %s352
        %p354 = pneg %p114
        %p355 = pneg %p111
        %s356 = sand.u32 %s137, 1
        %s357 = scalar_lea.sflag [#allocation11], %s356
        %s358 = sand.u32 %s137, 1
        %s359 = smul.addr %s358, 64
        %s360 = scalar_lea.vmem [#allocation10], %s359
        %p361 = pneg %p150
        %p362 = pneg %p147
        %s363 = smul.u32 8, %s43
        %p364 = scmp.lt.s32.totalorder %s363, 23
        %s365 = scalar_select %p364, %s363, 23
        %s366 = smul.addr %s365, 8
        %s367 = scalar_lea.vmem %s6, %s366
        %p368 = pneg %p176
        %p369 = pneg %p173
        %p370 = pneg %p202
        %p371 = pneg %p199
        %s372 = sand.u32 %s189, 1
        %s373 = scalar_lea.sflag [#allocation9], %s372
        %s374 = sand.u32 %s189, 1
        %s375 = smul.addr %s374, 32
        %s376 = scalar_lea.vmem [#allocation12], %s375
        %s377 = smul.u32 8, %s43
        %p378 = scmp.lt.s32.totalorder %s377, 23
        %s379 = scalar_select %p378, %s377, 23
        %s380 = smul.addr %s379, 4
        %s381 = scalar_lea.vmem %s3, %s380
        %s382 = smul.u32 8, %s43
        %s383 = sld [smem:[#allocation4 + %s44]]
        %s384 = smul.u32 %s44, 2
        %s385 = sadd.s32 %s384, %s45
        %s386 = sld [smem:[#allocation5 + %s385]]
        %s387 = smul.u32 16, %s386
        %s388 = sld [smem:[#allocation4 + %s44]]
        %s389 = smul.u32 %s44, 2
        %s390 = sadd.s32 %s389, %s45
        %s391 = sld [smem:[#allocation5 + %s390]]
        %s392 = smul.u32 8, %s43
        %p393 = scmp.lt.s32.totalorder %s392, 23
        %s394 = scalar_select %p393, %s392, 23
        %s395 = smul.addr %s394, 8
        %s396 = scalar_lea.vmem %s6, %s395
        %s397 = smul.u32 8, %s43
        %s398 = smul.u32 8, %s43
        %p400 = scmp.eq.s32.totalorder %s44, 0
        %p401 = scmp.eq.s32.totalorder %s45, 0
        %p402 = pnand %p400, %p401
        %p403 = pneg %p402
        // Predicated region
        $region45: #{tpu_custom_call.1} parent=35 // pred_check
          _
        $region46: #{tpu_custom_call.1} parent=35 // pred_check_branch
          %405 = sbr.rel (%p402) target = $region48
        $region47: #{tpu_custom_call.1} parent=35 // pred_region
          %406 = vst [vmem:[#allocation2] sm:$0xff] 0.0
          %407 = vst [vmem:[#allocation2 + $0x8] sm:$0xff] 0.0
          %408 = vst [vmem:[#allocation2 + $0x10] sm:$0xff] 0.0
          %409 = vst [vmem:[#allocation2 + $0x18] sm:$0xff] 0.0
          %410 = vst [vmem:[#allocation2 + $0x20] sm:$0xff] 0.0
          %411 = vst [vmem:[#allocation2 + $0x28] sm:$0xff] 0.0
          %412 = vst [vmem:[#allocation2 + $0x30] sm:$0xff] 0.0
          %413 = vst [vmem:[#allocation2 + $0x38] sm:$0xff] 0.0
        $region48: #{tpu_custom_call.1} parent=35 // pred_fallthru
          _
        %s414 = sld [smem:[#allocation6]]
        %p415 = scmp.lt.s32.totalorder %s44, %s414
        // Predicated region
        $region49: #{tpu_custom_call.1} parent=35 // pred_check
          %p416 = pneg %p415
        $region50: #{tpu_custom_call.1} parent=35 // pred_check_branch
          %418 = sbr.rel (%p416) target = $region52
        $region51: #{tpu_custom_call.1} parent=35 // pred_region
          %v419 = vld [vmem:[%s381] sm:$0xf]
          %v420 = vld [vmem:[%s381 + $0x4] sm:$0xf]
          %v421 = vld [vmem:[%s381 + $0x8] sm:$0xf]
          %v422 = vld [vmem:[%s381 + $0xc] sm:$0xf]
          %v423 = vld [vmem:[%s381 + $0x10] sm:$0xf]
          %v424 = vld [vmem:[%s381 + $0x14] sm:$0xf]
          %v425 = vld [vmem:[%s381 + $0x18] sm:$0xf]
          %v426 = vld [vmem:[%s381 + $0x1c] sm:$0xf]
          %v427 = vld [vmem:[%s328] sm:$0xf]
          %v428 = vld [vmem:[%s328 + $0x4] sm:$0xf]
          %v429 = vld [vmem:[%s328 + $0x8] sm:$0xf]
          %v430 = vld [vmem:[%s328 + $0xc] sm:$0xf]
          %v431 = vld [vmem:[%s328 + $0x10] sm:$0xf]
          %v432 = vld [vmem:[%s328 + $0x14] sm:$0xf]
          %v433 = vld [vmem:[%s328 + $0x18] sm:$0xf]
          %v434 = vld [vmem:[%s328 + $0x1c] sm:$0xf]
          %v435 = vld [vmem:[%s328 + $0x20] sm:$0xf]
          %v436 = vld [vmem:[%s328 + $0x24] sm:$0xf]
          %v437 = vld [vmem:[%s328 + $0x28] sm:$0xf]
          %v438 = vld [vmem:[%s328 + $0x2c] sm:$0xf]
          %v439 = vld [vmem:[%s328 + $0x30] sm:$0xf]
          %v440 = vld [vmem:[%s328 + $0x34] sm:$0xf]
          %v441 = vld [vmem:[%s328 + $0x38] sm:$0xf]
          %v442 = vld [vmem:[%s328 + $0x3c] sm:$0xf]
          %s443 = scalar_lea.vmem %s328, 64 [#allocation7]
          %v444 = vld [vmem:[%s443] sm:$0xf]
          %v445 = vld [vmem:[%s443 + $0x4] sm:$0xf]
          %v446 = vld [vmem:[%s443 + $0x8] sm:$0xf]
          %v447 = vld [vmem:[%s443 + $0xc] sm:$0xf]
          %v448 = vld [vmem:[%s443 + $0x10] sm:$0xf]
          %v449 = vld [vmem:[%s443 + $0x14] sm:$0xf]
          %v450 = vld [vmem:[%s443 + $0x18] sm:$0xf]
          %v451 = vld [vmem:[%s443 + $0x1c] sm:$0xf]
          %v452 = vld [vmem:[%s443 + $0x20] sm:$0xf]
          %v453 = vld [vmem:[%s443 + $0x24] sm:$0xf]
          %v454 = vld [vmem:[%s443 + $0x28] sm:$0xf]
          %v455 = vld [vmem:[%s443 + $0x2c] sm:$0xf]
          %v456 = vld [vmem:[%s443 + $0x30] sm:$0xf]
          %v457 = vld [vmem:[%s443 + $0x34] sm:$0xf]
          %v458 = vld [vmem:[%s443 + $0x38] sm:$0xf]
          %v459 = vld [vmem:[%s443 + $0x3c] sm:$0xf]
          %v468 = vunpack.c.l.b16 %v419
          %v469 = vunpack.c.l.b16 %v420
          %v470 = vunpack.c.l.b16 %v421
          %v471 = vunpack.c.l.b16 %v422
          %v472 = vunpack.c.l.b16 %v423
          %v473 = vunpack.c.l.b16 %v424
          %v474 = vunpack.c.l.b16 %v425
          %v475 = vunpack.c.l.b16 %v426
          %v476 = vpack.c.b16 %v469, %v468
          %v477 = vpack.c.b16 %v471, %v470
          %v478 = vpack.c.b16 %v473, %v472
          %v479 = vpack.c.b16 %v475, %v474
          %v500 = vunpack.c.l.b16 %v427
          %v501 = vunpack.c.l.b16 %v428
          %v502 = vunpack.c.l.b16 %v429
          %v503 = vunpack.c.l.b16 %v430
          %v504 = vunpack.c.l.b16 %v431
          %v505 = vunpack.c.l.b16 %v432
          %v506 = vunpack.c.l.b16 %v433
          %v507 = vunpack.c.l.b16 %v434
          %v508 = vunpack.c.l.b16 %v435
          %v509 = vunpack.c.l.b16 %v436
          %v510 = vunpack.c.l.b16 %v437
          %v511 = vunpack.c.l.b16 %v438
          %v512 = vunpack.c.l.b16 %v439
          %v513 = vunpack.c.l.b16 %v440
          %v514 = vunpack.c.l.b16 %v441
          %v515 = vunpack.c.l.b16 %v442
          %v516 = vpack.c.b16 %v501, %v500
          %v517 = vpack.c.b16 %v503, %v502
          %v518 = vpack.c.b16 %v505, %v504
          %v519 = vpack.c.b16 %v507, %v506
          %v520 = vpack.c.b16 %v509, %v508
          %v521 = vpack.c.b16 %v511, %v510
          %v522 = vpack.c.b16 %v513, %v512
          %v523 = vpack.c.b16 %v515, %v514
          %532 = vmatprep.subr.bf16.mxu0 0
          %533 = vmatpush1.bf16.xpose.msra.mxu0 %v516
          %534 = vmatprep.subr.bf16.mxu0 0
          %535 = vmatpush1.bf16.xpose.msra.mxu0 %v517
          %536 = vmatprep.subr.bf16.mxu0 0
          %537 = vmatpush1.bf16.xpose.msra.mxu0 %v518
          %538 = vmatprep.subr.bf16.mxu0 0
          %539 = vmatpush1.bf16.xpose.msra.mxu0 %v519
          %540 = vmatprep.subr.bf16.mxu0 0
          %541 = vmatpush1.bf16.xpose.msra.mxu0 %v520
          %542 = vmatprep.subr.bf16.mxu0 0
          %543 = vmatpush1.bf16.xpose.msra.mxu0 %v521
          %544 = vmatprep.subr.bf16.mxu0 0
          %545 = vmatpush1.bf16.xpose.msra.mxu0 %v522
          %546 = vmatprep.subr.bf16.mxu0 0
          %547 = vmatpush1.bf16.xpose.msra.mxu0 %v523
          %548 = vmatprep.subr.bf16.mxu0 0
          %549 = vmatpush1.bf16.xpose.msra.mxu0 0
          %550 = vmatprep.subr.bf16.mxu0 0
          %551 = vmatpush1.bf16.xpose.msra.mxu0 0
          %552 = vmatprep.subr.bf16.mxu0 0
          %553 = vmatpush1.bf16.xpose.msra.mxu0 0
          %554 = vmatprep.subr.bf16.mxu0 0
          %555 = vmatpush1.bf16.xpose.msra.mxu0 0
          %556 = vmatprep.subr.bf16.mxu0 0
          %557 = vmatpush1.bf16.xpose.msra.mxu0 0
          %558 = vmatprep.subr.bf16.mxu0 0
          %559 = vmatpush1.bf16.xpose.msra.mxu0 0
          %560 = vmatprep.subr.bf16.mxu0 0
          %561 = vmatpush1.bf16.xpose.msra.mxu0 0
          %562 = vmatprep.subr.bf16.mxu0 0
          %563 = vmatpush1.bf16.xpose.msra.mxu0 0
          %564 = vmatprep.mubr.bf16.mxu0 0
          %565 = vmatmul.mubr.bf16.gmra.mrb[0].mxu0 %v476
          %v566 = vpop.f32.mrb[0].mxu0
          %v567 = vadd.f32 0.0, %v566
          %v568 = vpop.f32.mrb[0].mxu0
          %v569 = vpop.f32.mrb[0].mxu0
          %v570 = vadd.f32 0.0, %v569
          %v571 = vpop.f32.mrb[0].mxu0
          %572 = vmatprep.mubr.bf16.mxu0 0
          %573 = vmatmul.mubr.bf16.gmra.mrb[0].mxu0 %v477
          %v574 = vpop.f32.mrb[0].mxu0
          %v575 = vadd.f32 0.0, %v574
          %v576 = vpop.f32.mrb[0].mxu0
          %v577 = vpop.f32.mrb[0].mxu0
          %v578 = vadd.f32 0.0, %v577
          %v579 = vpop.f32.mrb[0].mxu0
          %580 = vmatprep.mubr.bf16.mxu0 0
          %581 = vmatmul.mubr.bf16.gmra.mrb[0].mxu0 %v478
          %v582 = vpop.f32.mrb[0].mxu0
          %v583 = vadd.f32 0.0, %v582
          %v584 = vpop.f32.mrb[0].mxu0
          %v585 = vpop.f32.mrb[0].mxu0
          %v586 = vadd.f32 0.0, %v585
          %v587 = vpop.f32.mrb[0].mxu0
          %588 = vmatprep.mubr.bf16.mxu0 0
          %589 = vmatmul.mubr.bf16.gmra.mrb[0].mxu0 %v479
          %v590 = vpop.f32.mrb[0].mxu0
          %v591 = vadd.f32 0.0, %v590
          %v592 = vpop.f32.mrb[0].mxu0
          %v593 = vpop.f32.mrb[0].mxu0
          %v594 = vadd.f32 0.0, %v593
          %v595 = vpop.f32.mrb[0].mxu0
          %596 = vdwg.mxu0
          %v613 = vunpack.c.l.b16 %v444
          %v614 = vunpack.c.l.b16 %v445
          %v615 = vunpack.c.l.b16 %v446
          %v616 = vunpack.c.l.b16 %v447
          %v617 = vunpack.c.l.b16 %v448
          %v618 = vunpack.c.l.b16 %v449
          %v619 = vunpack.c.l.b16 %v450
          %v620 = vunpack.c.l.b16 %v451
          %v621 = vunpack.c.l.b16 %v452
          %v622 = vunpack.c.l.b16 %v453
          %v623 = vunpack.c.l.b16 %v454
          %v624 = vunpack.c.l.b16 %v455
          %v625 = vunpack.c.l.b16 %v456
          %v626 = vunpack.c.l.b16 %v457
          %v627 = vunpack.c.l.b16 %v458
          %v628 = vunpack.c.l.b16 %v459
          %v629 = vpack.c.b16 %v614, %v613
          %v630 = vpack.c.b16 %v616, %v615
          %v631 = vpack.c.b16 %v618, %v617
          %v632 = vpack.c.b16 %v620, %v619
          %v633 = vpack.c.b16 %v622, %v621
          %v634 = vpack.c.b16 %v624, %v623
          %v635 = vpack.c.b16 %v626, %v625
          %v636 = vpack.c.b16 %v628, %v627
          %645 = vmatprep.subr.bf16.mxu0 0
          %646 = vmatpush1.bf16.xpose.msra.mxu0 %v629
          %647 = vmatprep.subr.bf16.mxu0 0
          %648 = vmatpush1.bf16.xpose.msra.mxu0 %v630
          %649 = vmatprep.subr.bf16.mxu0 0
          %650 = vmatpush1.bf16.xpose.msra.mxu0 %v631
          %651 = vmatprep.subr.bf16.mxu0 0
          %652 = vmatpush1.bf16.xpose.msra.mxu0 %v632
          %653 = vmatprep.subr.bf16.mxu0 0
          %654 = vmatpush1.bf16.xpose.msra.mxu0 %v633
          %655 = vmatprep.subr.bf16.mxu0 0
          %656 = vmatpush1.bf16.xpose.msra.mxu0 %v634
          %657 = vmatprep.subr.bf16.mxu0 0
          %658 = vmatpush1.bf16.xpose.msra.mxu0 %v635
          %659 = vmatprep.subr.bf16.mxu0 0
          %660 = vmatpush1.bf16.xpose.msra.mxu0 %v636
          %661 = vmatprep.subr.bf16.mxu0 0
          %662 = vmatpush1.bf16.xpose.msra.mxu0 0
          %663 = vmatprep.subr.bf16.mxu0 0
          %664 = vmatpush1.bf16.xpose.msra.mxu0 0
          %665 = vmatprep.subr.bf16.mxu0 0
          %666 = vmatpush1.bf16.xpose.msra.mxu0 0
          %667 = vmatprep.subr.bf16.mxu0 0
          %668 = vmatpush1.bf16.xpose.msra.mxu0 0
          %669 = vmatprep.subr.bf16.mxu0 0
          %670 = vmatpush1.bf16.xpose.msra.mxu0 0
          %671 = vmatprep.subr.bf16.mxu0 0
          %672 = vmatpush1.bf16.xpose.msra.mxu0 0
          %673 = vmatprep.subr.bf16.mxu0 0
          %674 = vmatpush1.bf16.xpose.msra.mxu0 0
          %675 = vmatprep.subr.bf16.mxu0 0
          %676 = vmatpush1.bf16.xpose.msra.mxu0 0
          %677 = vmatprep.mubr.bf16.mxu0 0
          %678 = vmatmul.mubr.bf16.gmra.mrb[0].mxu0 %v476
          %v679 = vpop.f32.mrb[0].mxu0
          %v680 = vadd.f32 0.0, %v679
          %v681 = vpop.f32.mrb[0].mxu0
          %v682 = vpop.f32.mrb[0].mxu0
          %v683 = vadd.f32 0.0, %v682
          %v684 = vpop.f32.mrb[0].mxu0
          %685 = vmatprep.mubr.bf16.mxu0 0
          %686 = vmatmul.mubr.bf16.gmra.mrb[0].mxu0 %v477
          %v687 = vpop.f32.mrb[0].mxu0
          %v688 = vadd.f32 0.0, %v687
          %v689 = vpop.f32.mrb[0].mxu0
          %v690 = vpop.f32.mrb[0].mxu0
          %v691 = vadd.f32 0.0, %v690
          %v692 = vpop.f32.mrb[0].mxu0
          %693 = vmatprep.mubr.bf16.mxu0 0
          %694 = vmatmul.mubr.bf16.gmra.mrb[0].mxu0 %v478
          %v695 = vpop.f32.mrb[0].mxu0
          %v696 = vadd.f32 0.0, %v695
          %v697 = vpop.f32.mrb[0].mxu0
          %v698 = vpop.f32.mrb[0].mxu0
          %v699 = vadd.f32 0.0, %v698
          %v700 = vpop.f32.mrb[0].mxu0
          %701 = vmatprep.mubr.bf16.mxu0 0
          %702 = vmatmul.mubr.bf16.gmra.mrb[0].mxu0 %v479
          %v703 = vpop.f32.mrb[0].mxu0
          %v704 = vadd.f32 0.0, %v703
          %v705 = vpop.f32.mrb[0].mxu0
          %v706 = vpop.f32.mrb[0].mxu0
          %v707 = vadd.f32 0.0, %v706
          %v708 = vpop.f32.mrb[0].mxu0
          %709 = vdwg.mxu0
          %v710 = vxor.u32 %v567, 2147483648
          %v711 = vxor.u32 %v570, 2147483648
          %v712 = vxor.u32 %v575, 2147483648
          %v713 = vxor.u32 %v578, 2147483648
          %v714 = vxor.u32 %v583, 2147483648
          %v715 = vxor.u32 %v586, 2147483648
          %v716 = vxor.u32 %v591, 2147483648
          %v717 = vxor.u32 %v594, 2147483648
          %v718 = vmul.f32 %v710, 1.442695
          %v719 = vpow.pop %v718
          %v720 = vmul.f32 %v711, 1.442695
          %v721 = vpow.pop %v720
          %v722 = vmul.f32 %v712, 1.442695
          %v723 = vpow.pop %v722
          %v724 = vmul.f32 %v713, 1.442695
          %v725 = vpow.pop %v724
          %v726 = vmul.f32 %v714, 1.442695
          %v727 = vpow.pop %v726
          %v728 = vmul.f32 %v715, 1.442695
          %v729 = vpow.pop %v728
          %v730 = vmul.f32 %v716, 1.442695
          %v731 = vpow.pop %v730
          %v732 = vmul.f32 %v717, 1.442695
          %v733 = vpow.pop %v732
          %v734 = vadd.f32 %v719, 1.0
          %v735 = vadd.f32 %v721, 1.0
          %v736 = vadd.f32 %v723, 1.0
          %v737 = vadd.f32 %v725, 1.0
          %v738 = vadd.f32 %v727, 1.0
          %v739 = vadd.f32 %v729, 1.0
          %v740 = vadd.f32 %v731, 1.0
          %v741 = vadd.f32 %v733, 1.0
          %v742 = vrcp.pop %v734
          %v743 = vmul.f32 1.0, %v742
          %v744 = vrcp.pop %v735
          %v745 = vmul.f32 1.0, %v744
          %v746 = vrcp.pop %v736
          %v747 = vmul.f32 1.0, %v746
          %v748 = vrcp.pop %v737
          %v749 = vmul.f32 1.0, %v748
          %v750 = vrcp.pop %v738
          %v751 = vmul.f32 1.0, %v750
          %v752 = vrcp.pop %v739
          %v753 = vmul.f32 1.0, %v752
          %v754 = vrcp.pop %v740
          %v755 = vmul.f32 1.0, %v754
          %v756 = vrcp.pop %v741
          %v757 = vmul.f32 1.0, %v756
          %v758 = vmul.f32 %v567, %v743
          %v759 = vmul.f32 %v570, %v745
          %v760 = vmul.f32 %v575, %v747
          %v761 = vmul.f32 %v578, %v749
          %v762 = vmul.f32 %v583, %v751
          %v763 = vmul.f32 %v586, %v753
          %v764 = vmul.f32 %v591, %v755
          %v765 = vmul.f32 %v594, %v757
          %v766 = vmul.f32 %v758, %v680
          %v767 = vmul.f32 %v759, %v683
          %v768 = vmul.f32 %v760, %v688
          %v769 = vmul.f32 %v761, %v691
          %v770 = vmul.f32 %v762, %v696
          %v771 = vmul.f32 %v763, %v699
          %v772 = vmul.f32 %v764, %v704
          %v773 = vmul.f32 %v765, %v707
          %v774 = vpack.c.bf16 %v767, %v766
          %v775 = vpack.c.bf16 %v769, %v768
          %v776 = vpack.c.bf16 %v771, %v770
          %v777 = vpack.c.bf16 %v773, %v772
          %v778 = vld [vmem:[%s337] sm:$0xf]
          %v779 = vld [vmem:[%s337 + $0x4] sm:$0xf]
          %v780 = vld [vmem:[%s337 + $0x8] sm:$0xf]
          %v781 = vld [vmem:[%s337 + $0xc] sm:$0xf]
          %v782 = vld [vmem:[%s337 + $0x10] sm:$0xf]
          %v783 = vld [vmem:[%s337 + $0x14] sm:$0xf]
          %v784 = vld [vmem:[%s337 + $0x18] sm:$0xf]
          %v785 = vld [vmem:[%s337 + $0x1c] sm:$0xf]
          %v786 = vld [vmem:[%s337 + $0x20] sm:$0xf]
          %v787 = vld [vmem:[%s337 + $0x24] sm:$0xf]
          %v788 = vld [vmem:[%s337 + $0x28] sm:$0xf]
          %v789 = vld [vmem:[%s337 + $0x2c] sm:$0xf]
          %v790 = vld [vmem:[%s337 + $0x30] sm:$0xf]
          %v791 = vld [vmem:[%s337 + $0x34] sm:$0xf]
          %v792 = vld [vmem:[%s337 + $0x38] sm:$0xf]
          %v793 = vld [vmem:[%s337 + $0x3c] sm:$0xf]
          %v810 = vunpack.c.l.b16 %v778
          %v811 = vunpack.c.l.b16 %v779
          %v812 = vunpack.c.l.b16 %v780
          %v813 = vunpack.c.l.b16 %v781
          %v814 = vunpack.c.l.b16 %v782
          %v815 = vunpack.c.l.b16 %v783
          %v816 = vunpack.c.l.b16 %v784
          %v817 = vunpack.c.l.b16 %v785
          %v818 = vunpack.c.l.b16 %v786
          %v819 = vunpack.c.l.b16 %v787
          %v820 = vunpack.c.l.b16 %v788
          %v821 = vunpack.c.l.b16 %v789
          %v822 = vunpack.c.l.b16 %v790
          %v823 = vunpack.c.l.b16 %v791
          %v824 = vunpack.c.l.b16 %v792
          %v825 = vunpack.c.l.b16 %v793
          %v826 = vpack.c.b16 %v811, %v810
          %v827 = vpack.c.b16 %v813, %v812
          %v828 = vpack.c.b16 %v815, %v814
          %v829 = vpack.c.b16 %v817, %v816
          %v830 = vpack.c.b16 %v819, %v818
          %v831 = vpack.c.b16 %v821, %v820
          %v832 = vpack.c.b16 %v823, %v822
          %v833 = vpack.c.b16 %v825, %v824
          %842 = vmatprep.subr.bf16.mxu0 0
          %843 = vmatpush1.bf16.xpose.msra.mxu0 %v826
          %844 = vmatprep.subr.bf16.mxu0 0
          %845 = vmatpush1.bf16.xpose.msra.mxu0 %v827
          %846 = vmatprep.subr.bf16.mxu0 0
          %847 = vmatpush1.bf16.xpose.msra.mxu0 %v828
          %848 = vmatprep.subr.bf16.mxu0 0
          %849 = vmatpush1.bf16.xpose.msra.mxu0 %v829
          %850 = vmatprep.subr.bf16.mxu0 0
          %851 = vmatpush1.bf16.xpose.msra.mxu0 %v830
          %852 = vmatprep.subr.bf16.mxu0 0
          %853 = vmatpush1.bf16.xpose.msra.mxu0 %v831
          %854 = vmatprep.subr.bf16.mxu0 0
          %855 = vmatpush1.bf16.xpose.msra.mxu0 %v832
          %856 = vmatprep.subr.bf16.mxu0 0
          %857 = vmatpush1.bf16.xpose.msra.mxu0 %v833
          %858 = vmatprep.subr.bf16.mxu0 0
          %859 = vmatpush1.bf16.xpose.msra.mxu0 0
          %860 = vmatprep.subr.bf16.mxu0 0
          %861 = vmatpush1.bf16.xpose.msra.mxu0 0
          %862 = vmatprep.subr.bf16.mxu0 0
          %863 = vmatpush1.bf16.xpose.msra.mxu0 0
          %864 = vmatprep.subr.bf16.mxu0 0
          %865 = vmatpush1.bf16.xpose.msra.mxu0 0
          %866 = vmatprep.subr.bf16.mxu0 0
          %867 = vmatpush1.bf16.xpose.msra.mxu0 0
          %868 = vmatprep.subr.bf16.mxu0 0
          %869 = vmatpush1.bf16.xpose.msra.mxu0 0
          %870 = vmatprep.subr.bf16.mxu0 0
          %871 = vmatpush1.bf16.xpose.msra.mxu0 0
          %872 = vmatprep.subr.bf16.mxu0 0
          %873 = vmatpush1.bf16.xpose.msra.mxu0 0
          %874 = vmatprep.mubr.bf16.mxu0 0
          %875 = vmatmul.mubr.bf16.gmra.mrb[0].mxu0 %v774
          %v876 = vpop.f32.mrb[0].mxu0
          %v877 = vadd.f32 0.0, %v876
          %v878 = vpop.f32.mrb[0].mxu0
          %v879 = vpop.f32.mrb[0].mxu0
          %v880 = vadd.f32 0.0, %v879
          %v881 = vpop.f32.mrb[0].mxu0
          %882 = vmatprep.mubr.bf16.mxu0 0
          %883 = vmatmul.mubr.bf16.gmra.mrb[0].mxu0 %v775
          %v884 = vpop.f32.mrb[0].mxu0
          %v885 = vadd.f32 0.0, %v884
          %v886 = vpop.f32.mrb[0].mxu0
          %v887 = vpop.f32.mrb[0].mxu0
          %v888 = vadd.f32 0.0, %v887
          %v889 = vpop.f32.mrb[0].mxu0
          %890 = vmatprep.mubr.bf16.mxu0 0
          %891 = vmatmul.mubr.bf16.gmra.mrb[0].mxu0 %v776
          %v892 = vpop.f32.mrb[0].mxu0
          %v893 = vadd.f32 0.0, %v892
          %v894 = vpop.f32.mrb[0].mxu0
          %v895 = vpop.f32.mrb[0].mxu0
          %v896 = vadd.f32 0.0, %v895
          %v897 = vpop.f32.mrb[0].mxu0
          %898 = vmatprep.mubr.bf16.mxu0 0
          %899 = vmatmul.mubr.bf16.gmra.mrb[0].mxu0 %v777
          %v900 = vpop.f32.mrb[0].mxu0
          %v901 = vadd.f32 0.0, %v900
          %v902 = vpop.f32.mrb[0].mxu0
          %v903 = vpop.f32.mrb[0].mxu0
          %v904 = vadd.f32 0.0, %v903
          %v905 = vpop.f32.mrb[0].mxu0
          %906 = vdwg.mxu0
          %s907 = sld [smem:[#allocation4 + %s44]]
          %v908 = vld [vmem:[%s396] sm:$0xff]
          %v909 = vld [vmem:[%s396 + $0x8] sm:$0xff]
          %v910 = vld [vmem:[%s396 + $0x10] sm:$0xff]
          %v911 = vld [vmem:[%s396 + $0x18] sm:$0xff]
          %v912 = vld [vmem:[%s396 + $0x20] sm:$0xff]
          %v913 = vld [vmem:[%s396 + $0x28] sm:$0xff]
          %v914 = vld [vmem:[%s396 + $0x30] sm:$0xff]
          %v915 = vld [vmem:[%s396 + $0x38] sm:$0xff]
          %v916 = vlaneseq
          %v917 = vand.u32 %v916, 127
          %v918 = vstv %s907
          %vm919 = vcmp.eq.s32.totalorder %v917, %v918
          %v920 = vsel %vm919, %v908, 0.0
          %v921 = vsel %vm919, %v909, 0.0
          %v922 = vsel %vm919, %v910, 0.0
          %v923 = vsel %vm919, %v911, 0.0
          %v924 = vsel %vm919, %v912, 0.0
          %v925 = vsel %vm919, %v913, 0.0
          %v926 = vsel %vm919, %v914, 0.0
          %v927 = vsel %vm919, %v915, 0.0
          %vm928 = vcmask 64512
          %v929 = vsel %vm928, %v920, 0.0
          %930 = vadd.xlane.f32.xlu0 %v929
          %v931 = vpop.xlane.xlu0 %930
          %v932 = vsel %vm928, %v921, 0.0
          %933 = vadd.xlane.f32.xlu0 %v932
          %v934 = vpop.xlane.xlu0 %933
          %v935 = vsel %vm928, %v922, 0.0
          %936 = vadd.xlane.f32.xlu0 %v935
          %v937 = vpop.xlane.xlu0 %936
          %v938 = vsel %vm928, %v923, 0.0
          %939 = vadd.xlane.f32.xlu0 %v938
          %v940 = vpop.xlane.xlu0 %939
          %v941 = vsel %vm928, %v924, 0.0
          %942 = vadd.xlane.f32.xlu0 %v941
          %v943 = vpop.xlane.xlu0 %942
          %v944 = vsel %vm928, %v925, 0.0
          %945 = vadd.xlane.f32.xlu0 %v944
          %v946 = vpop.xlane.xlu0 %945
          %v947 = vsel %vm928, %v926, 0.0
          %948 = vadd.xlane.f32.xlu0 %v947
          %v949 = vpop.xlane.xlu0 %948
          %v950 = vsel %vm928, %v927, 0.0
          %951 = vadd.xlane.f32.xlu0 %v950
          %v952 = vpop.xlane.xlu0 %951
          %v953 = vld [vmem:[#allocation2] sm:$0xff]
          %v954 = vld [vmem:[#allocation2 + $0x8] sm:$0xff]
          %v955 = vld [vmem:[#allocation2 + $0x10] sm:$0xff]
          %v956 = vld [vmem:[#allocation2 + $0x18] sm:$0xff]
          %v957 = vld [vmem:[#allocation2 + $0x20] sm:$0xff]
          %v958 = vld [vmem:[#allocation2 + $0x28] sm:$0xff]
          %v959 = vld [vmem:[#allocation2 + $0x30] sm:$0xff]
          %v960 = vld [vmem:[#allocation2 + $0x38] sm:$0xff]
          %v961 = vmul.f32 %v877, %v931
          %v962 = vmul.f32 %v880, %v934
          %v963 = vmul.f32 %v885, %v937
          %v964 = vmul.f32 %v888, %v940
          %v965 = vmul.f32 %v893, %v943
          %v966 = vmul.f32 %v896, %v946
          %v967 = vmul.f32 %v901, %v949
          %v968 = vmul.f32 %v904, %v952
          %v969 = vadd.f32 %v953, %v961
          %v970 = vadd.f32 %v954, %v962
          %v971 = vadd.f32 %v955, %v963
          %v972 = vadd.f32 %v956, %v964
          %v973 = vadd.f32 %v957, %v965
          %v974 = vadd.f32 %v958, %v966
          %v975 = vadd.f32 %v959, %v967
          %v976 = vadd.f32 %v960, %v968
          %977 = vst [vmem:[#allocation2] sm:$0xff] %v969
          %978 = vst [vmem:[#allocation2 + $0x8] sm:$0xff] %v970
          %979 = vst [vmem:[#allocation2 + $0x10] sm:$0xff] %v971
          %980 = vst [vmem:[#allocation2 + $0x18] sm:$0xff] %v972
          %981 = vst [vmem:[#allocation2 + $0x20] sm:$0xff] %v973
          %982 = vst [vmem:[#allocation2 + $0x28] sm:$0xff] %v974
          %983 = vst [vmem:[#allocation2 + $0x30] sm:$0xff] %v975
          %984 = vst [vmem:[#allocation2 + $0x38] sm:$0xff] %v976
        $region52: #{tpu_custom_call.1} parent=35 // pred_fallthru
          _
        %p985 = scmp.eq.s32.totalorder %s44, 7
        %p986 = scmp.eq.s32.totalorder %s45, 1
        %p987 = pnand %p985, %p986
        %p988 = pneg %p987
        // Predicated region
        $region53: #{tpu_custom_call.1} parent=35 // pred_check
          _
        $region54: #{tpu_custom_call.1} parent=35 // pred_check_branch
          %990 = sbr.rel (%p987) target = $region56
        $region55: #{tpu_custom_call.1} parent=35 // pred_region
          %v991 = vld [vmem:[#allocation2] sm:$0xff]
          %v992 = vld [vmem:[#allocation2 + $0x8] sm:$0xff]
          %v993 = vld [vmem:[#allocation2 + $0x10] sm:$0xff]
          %v994 = vld [vmem:[#allocation2 + $0x18] sm:$0xff]
          %v995 = vld [vmem:[#allocation2 + $0x20] sm:$0xff]
          %v996 = vld [vmem:[#allocation2 + $0x28] sm:$0xff]
          %v997 = vld [vmem:[#allocation2 + $0x30] sm:$0xff]
          %v998 = vld [vmem:[#allocation2 + $0x38] sm:$0xff]
          %v999 = vpack.c.bf16 %v992, %v991
          %v1000 = vpack.c.bf16 %v994, %v993
          %v1001 = vpack.c.bf16 %v996, %v995
          %v1002 = vpack.c.bf16 %v998, %v997
          %v1007 = vunpack.c.l.b16 %v999
          %v1008 = vunpack.c.h.b16 %v999
          %v1009 = vunpack.c.l.b16 %v1000
          %v1010 = vunpack.c.h.b16 %v1000
          %v1011 = vunpack.c.l.b16 %v1001
          %v1012 = vunpack.c.h.b16 %v1001
          %v1013 = vunpack.c.l.b16 %v1002
          %v1014 = vunpack.c.h.b16 %v1002
          %v1015 = vpack.c.b16 %v1007, %v1007
          %v1016 = vpack.c.b16 %v1008, %v1008
          %v1017 = vpack.c.b16 %v1009, %v1009
          %v1018 = vpack.c.b16 %v1010, %v1010
          %v1019 = vpack.c.b16 %v1011, %v1011
          %v1020 = vpack.c.b16 %v1012, %v1012
          %v1021 = vpack.c.b16 %v1013, %v1013
          %v1022 = vpack.c.b16 %v1014, %v1014
          %1031 = vst [vmem:[%s376] sm:$0xf] %v1015
          %1032 = vst [vmem:[%s376 + $0x4] sm:$0xf] %v1016
          %1033 = vst [vmem:[%s376 + $0x8] sm:$0xf] %v1017
          %1034 = vst [vmem:[%s376 + $0xc] sm:$0xf] %v1018
          %1035 = vst [vmem:[%s376 + $0x10] sm:$0xf] %v1019
          %1036 = vst [vmem:[%s376 + $0x14] sm:$0xf] %v1020
          %1037 = vst [vmem:[%s376 + $0x18] sm:$0xf] %v1021
          %1038 = vst [vmem:[%s376 + $0x1c] sm:$0xf] %v1022
        $region56: #{tpu_custom_call.1} parent=35 // pred_fallthru
          _
        %s1039 = sand.u32 %s189, 1
        %s1040 = scalar_lea.sflag [#allocation9], %s1039
        %s1041 = sand.u32 %s189, 1
        %s1042 = smul.addr %s1041, 32
        %s1043 = scalar_lea.vmem [#allocation12], %s1042
        // Predicated region
        $region57: #{tpu_custom_call.1} parent=35 // pred_check
          %p1044 = pneg %p199
        $region58: #{tpu_custom_call.1} parent=35 // pred_check_branch
          %1046 = sbr.rel (%p1044) target = $region60
        $region59: #{tpu_custom_call.1} parent=35 // pred_region
          %s1047 = smul.u32 8, %s43
          %s1049 = ssub.s32 512, 512
          %1050 = vsyncadd %s1040, %s1049
          %s1051 = smul.addr %s1047, 64
          %s1052 = scalar_lea.hbm %s7, %s1051
          %s1053 = sshll.u32 %s1043, 4
          %s1054 = int_to_ptr.vmem [resolvable:$true] %s1053
          %1059 = dma.vmem_to_hbm [thread:$0]  %s1054, 512, %s1052, %s1040, 64, 64, 4
        $region60: #{tpu_custom_call.1} parent=35 // pred_fallthru
          _
      $region36: #{tpu_custom_call.1} parent=5 // pred_fallthru
        _
      %p1060 = scmp.le.s32.totalorder 2, %s33
      // Predicated region
      $region61: #{tpu_custom_call.1} parent=5 // pred_check
        %p1061 = pneg %p1060
      $region62: #{tpu_custom_call.1} parent=5 // pred_check_branch
        %1063 = sbr.rel (%p1061) target = $region64
      $region63: #{tpu_custom_call.1} parent=5 // pred_region
        %s1064 = ssub.s32 %s33, 2
        // Predicated region
        $region65: #{tpu_custom_call.1} parent=63 // pred_check
          %p1065 = pneg %p205
        $region66: #{tpu_custom_call.1} parent=63 // pred_check_branch
          %1067 = sbr.rel (%p1065) target = $region68
        $region67: #{tpu_custom_call.1} parent=63 // pred_region
          %s1068 = sand.u32 %s190, 1
          %s1069 = scalar_lea.sflag [#allocation9], %s1068
          %s1070 = sand.u32 %s190, 1
          %s1071 = smul.addr %s1070, 32
          %s1072 = scalar_lea.vmem [#allocation12], %s1071
          %1073 = dma.done %s1069, 512
        $region68: #{tpu_custom_call.1} parent=63 // pred_fallthru
          _
      $region64: #{tpu_custom_call.1} parent=5 // pred_fallthru
        _
    $region6: #{tpu_custom_call.1} parent=1 // loop_footer
      %s37 = sadd.s32 1, %s33
    $region7: #{tpu_custom_call.1} parent=1 // loop_footer_branch
      %32 = sbr.rel target = $region3
    $region8: #{tpu_custom_call.1} parent=1 // loop_exit
      _
    %1074 = vsyncpa [#allocation8], 1
    %s1075 = scalar_lea.sflag [#allocation8], 1
    %1076 = vsyncpa %s1075, 1
    %1077 = vsyncpa [#allocation11], 1
    %s1078 = scalar_lea.sflag [#allocation11], 1
    %1079 = vsyncpa %s1078, 1
    %1080 = vsyncpa [#allocation9], 1
    %s1081 = scalar_lea.sflag [#allocation9], 1
    %1082 = vsyncpa %s1081, 1

</llo_original>
